<compile_context>
chip_gen: v6e
topology: v6e:2x2x1
jax: 0.10.0
libtpu: 0.0.40
codegen_flags: <defaults>
</compile_context>

<pallas_src>
import functools

import jax
import jax.numpy as jnp
from jax.experimental import pallas as pl
from jax.experimental.pallas import tpu as pltpu


def actor_critic_kernel(x_ref, w1_ref, b1_ref, w2_ref, b2_ref,
                        wh_ref, bh_ref, out_ref):
    # f32 -> bf16 cast done in-kernel (VPU, hidden under MXU slack).
    x = x_ref[...].astype(jnp.bfloat16)

    # shared layer 1: (TB, Ip) @ (Ip, Hp) + (1, Hp) -> ReLU
    h = jnp.dot(x, w1_ref[...], preferred_element_type=jnp.float32)
    h = jnp.maximum(h + b1_ref[...], 0.0).astype(jnp.bfloat16)

    # shared layer 2: (TB, Hp) @ (Hp, Hp) + (1, Hp) -> ReLU
    h = jnp.dot(h, w2_ref[...], preferred_element_type=jnp.float32)
    h = jnp.maximum(h + b2_ref[...], 0.0).astype(jnp.bfloat16)

    # fused actor|critic head: (TB, Hp) @ (Hp, Np) + (1, Np), lane-dense store
    out = jnp.dot(h, wh_ref[...], preferred_element_type=jnp.float32) + bh_ref[...]
    out_ref[...] = out.astype(out_ref.dtype)


def pack_params(params, *, lane=128):
    """Fuse actor/critic heads, zero-pad input / hidden / head-output dims to
    `lane`, and cast weights to bf16 (biases stay f32; padding is exact zeros,
    so results are unchanged)."""
    def pad_to(a, rows, cols):
        return jnp.pad(a, ((0, rows - a.shape[0]), (0, cols - a.shape[1])))

    I, H = params["w1"].shape
    O = params["wa"].shape[1]
    Ip = pl.cdiv(I, lane) * lane
    Hp = pl.cdiv(H, lane) * lane
    Np = pl.cdiv(O + 1, lane) * lane

    wh = jnp.concatenate([params["wa"], params["wc"]], axis=1)   # (H, O+1)
    bh = jnp.concatenate([params["ba"], params["bc"]], axis=1)   # (1, O+1)

    return dict(
        w1=pad_to(params["w1"], Ip, Hp).astype(jnp.bfloat16),
        b1=pad_to(params["b1"], 1, Hp),
        w2=pad_to(params["w2"], Hp, Hp).astype(jnp.bfloat16),
        b2=pad_to(params["b2"], 1, Hp),
        wh=pad_to(wh, Hp, Np).astype(jnp.bfloat16),
        bh=pad_to(bh, 1, Np),
    )


def _pick_batch_tiling(batch, max_tile=1024):
    """Few, large batch tiles: 1 tile for tiny batches, exactly 2 tiles (so
    both v7x TensorCores get work through the 'parallel' axis) up to
    2*max_tile rows, then max_tile-row tiles.  Tiles stay 8-row aligned."""
    if batch <= 128:
        block_b = ((batch + 7) // 8) * 8
    elif batch <= 2 * max_tile:
        block_b = (((batch + 15) // 16) * 16) // 2
    else:
        block_b = max_tile
    padded_b = pl.cdiv(batch, block_b) * block_b
    return padded_b, block_b


@functools.partial(jax.jit, static_argnames=("output_size", "block_b"))
def actor_critic_forward(x, packed, *, output_size, block_b=None):
    """x: (B, I) float32; packed: output of pack_params. Returns (actor, critic)."""
    B, I = x.shape
    Ip, Hp = packed["w1"].shape
    Np = packed["wh"].shape[1]

    if block_b is None:
        Bp, block_b = _pick_batch_tiling(B)
    else:
        Bp = pl.cdiv(B, block_b) * block_b

    # Single pad HLO covering both batch and feature padding (or none at all).
    if Bp != B or Ip != I:
        x = jnp.pad(x, ((0, Bp - B), (0, Ip - I)))

    grid = (Bp // block_b,)
    # Constant block index -> weights/biases stay VMEM-resident across tiles.
    # (pl.Buffered(1) here would also drop their dead second buffer, ~100 KB;
    #  left at default since per-step VMEM is ~0.5 MiB total.)
    resident = lambda shape: pl.BlockSpec(shape, lambda i: (0, 0))

    flops = 2 * Bp * (Ip * Hp + Hp * Hp + Hp * Np)
    bytes_accessed = (Bp * Ip * 4
                      + sum(int(v.size) * v.dtype.itemsize for v in packed.values())
                      + Bp * Np * 4)

    out = pl.pallas_call(
        actor_critic_kernel,
        out_shape=jax.ShapeDtypeStruct((Bp, Np), jnp.float32),
        grid_spec=pl.GridSpec(
            grid=grid,
            in_specs=[
                pl.BlockSpec((block_b, Ip), lambda i: (i, 0)),   # x batch tile
                resident((Ip, Hp)),    # w1
                resident((1, Hp)),     # b1
                resident((Hp, Hp)),    # w2
                resident((1, Hp)),     # b2
                resident((Hp, Np)),    # fused actor|critic weight
                resident((1, Np)),     # fused actor|critic bias
            ],
            out_specs=pl.BlockSpec((block_b, Np), lambda i: (i, 0)),
        ),
        compiler_params=pltpu.CompilerParams(
            dimension_semantics=(pltpu.PARALLEL,),   # batch tiles independent
        ),
        cost_estimate=pl.CostEstimate(
            flops=flops, transcendentals=0, bytes_accessed=bytes_accessed),
    )(x, packed["w1"], packed["b1"], packed["w2"], packed["b2"],
      packed["wh"], packed["bh"])

    # One slice of the padded (Bp, 128) buffer, then split the small slice.
    head = out[:B, :output_size + 1]
    return head[:, :output_size], head[:, output_size:output_size + 1]


def init_params(key, input_size, hidden_size, output_size):
    """Deterministic init mimicking nn.Linear's U(-1/sqrt(fan_in), 1/sqrt(fan_in)).
    Weights stored as (in, out) == PyTorch weight.T."""
    def linear(k, fan_in, fan_out):
        kw, kb = jax.random.split(k)
        bound = 1.0 / jnp.sqrt(float(fan_in))
        w = jax.random.uniform(kw, (fan_in, fan_out), jnp.float32, -bound, bound)
        b = jax.random.uniform(kb, (1, fan_out), jnp.float32, -bound, bound)
        return w, b

    k1, k2, k3, k4 = jax.random.split(key, 4)
    w1, b1 = linear(k1, input_size, hidden_size)
    w2, b2 = linear(k2, hidden_size, hidden_size)
    wa, ba = linear(k3, hidden_size, output_size)
    wc, bc = linear(k4, hidden_size, 1)
    return dict(w1=w1, b1=b1, w2=w2, b2=b2, wa=wa, ba=ba, wc=wc, bc=bc)


def reference_forward_bf16(x, p):
    """Same math as the kernel (bf16 weights/activations, f32 accumulation) on
    the *unpacked* params — validates head fusion, zero-padding and tiling."""
    cast = lambda a: a.astype(jnp.bfloat16)
    h = jnp.dot(cast(x), cast(p["w1"]), preferred_element_type=jnp.float32)
    h = jnp.maximum(h + p["b1"], 0.0)
    h = jnp.dot(cast(h), cast(p["w2"]), preferred_element_type=jnp.float32)
    h = jnp.maximum(h + p["b2"], 0.0)
    hb = cast(h)
    actor = jnp.dot(hb, cast(p["wa"]), preferred_element_type=jnp.float32) + p["ba"]
    critic = jnp.dot(hb, cast(p["wc"]), preferred_element_type=jnp.float32) + p["bc"]
    return actor, critic


def reference_forward_f32(x, p):
    """Pure f32 math == the PyTorch ActorCritic forward (precision bound)."""
    h = jnp.maximum(x @ p["w1"] + p["b1"], 0.0)
    h = jnp.maximum(h @ p["w2"] + p["b2"], 0.0)
    return h @ p["wa"] + p["ba"], h @ p["wc"] + p["bc"]


if __name__ == "__main__":
    # Snake PPO: state vector of 11 features, 3 actions; a PPO-rollout-sized batch.
    batch, input_size, hidden_size, output_size = 256, 11, 32, 3

    key = jax.random.PRNGKey(0)
    k_x, k_p = jax.random.split(key)
    x = jax.random.normal(k_x, (batch, input_size), jnp.float32)
    params = init_params(k_p, input_size, hidden_size, output_size)
    packed = pack_params(params)

    actor_logits, critic_value = actor_critic_forward(
        x, packed, output_size=output_size)
    jax.block_until_ready((actor_logits, critic_value))

    assert actor_logits.shape == (batch, output_size)
    assert critic_value.shape == (batch, 1)

    # (1) bf16-matched reference: tight tolerance, validates kernel structure.
    ref_a, ref_c = reference_forward_bf16(x, params)
    assert jnp.allclose(actor_logits, ref_a, atol=1e-3, rtol=1e-3)
    assert jnp.allclose(critic_value, ref_c, atol=1e-3, rtol=1e-3)

    # (2) pure f32 reference (PyTorch-equivalent): bounds bf16 precision drift.
    f32_a, f32_c = reference_forward_f32(x, params)
    assert jnp.allclose(actor_logits, f32_a, atol=5e-2, rtol=5e-2)
    assert jnp.allclose(critic_value, f32_c, atol=5e-2, rtol=5e-2)

    print("KERNEL_OK")
</pallas_src>

<mosaic_0001>
module attributes {stable_mosaic.version = 11 : i64} {
  func.func @actor_critic_kernel(%arg0: i32, %arg1: memref<128x128xf32, #tpu.memory_space<vmem>>, %arg2: memref<128x128xbf16, #tpu.memory_space<vmem>>, %arg3: memref<1x128xf32, #tpu.memory_space<vmem>>, %arg4: memref<128x128xbf16, #tpu.memory_space<vmem>>, %arg5: memref<1x128xf32, #tpu.memory_space<vmem>>, %arg6: memref<128x128xbf16, #tpu.memory_space<vmem>>, %arg7: memref<1x128xf32, #tpu.memory_space<vmem>>, %arg8: memref<128x128xf32, #tpu.memory_space<vmem>>) attributes {dimension_semantics = [#tpu.dimension_semantics<parallel>], iteration_bounds = array<i64: 2>, scalar_prefetch = 0 : i64, scratch_operands = 0 : i64, tpu.core_type = #tpu.core_type<tc>, window_params = [{transform_indices = @transform_0, window_bounds = array<i64: 128, 128>}, {pipeline_mode = #tpu.pipeline_mode<synchronous>, transform_indices = @transform_1, window_bounds = array<i64: 128, 128>}, {pipeline_mode = #tpu.pipeline_mode<synchronous>, transform_indices = @transform_2, window_bounds = array<i64: 1, 128>}, {pipeline_mode = #tpu.pipeline_mode<synchronous>, transform_indices = @transform_3, window_bounds = array<i64: 128, 128>}, {pipeline_mode = #tpu.pipeline_mode<synchronous>, transform_indices = @transform_4, window_bounds = array<i64: 1, 128>}, {pipeline_mode = #tpu.pipeline_mode<synchronous>, transform_indices = @transform_5, window_bounds = array<i64: 128, 128>}, {pipeline_mode = #tpu.pipeline_mode<synchronous>, transform_indices = @transform_6, window_bounds = array<i64: 1, 128>}, {transform_indices = @transform_7, window_bounds = array<i64: 128, 128>}]} {
    %c0 = arith.constant 0 : index
    %c0_0 = arith.constant 0 : index
    %0 = vector.load %arg1[%c0, %c0_0] : memref<128x128xf32, #tpu.memory_space<vmem>>, vector<128x128xf32>
    %1 = arith.truncf %0 : vector<128x128xf32> to vector<128x128xbf16>
    %c0_1 = arith.constant 0 : index
    %c0_2 = arith.constant 0 : index
    %2 = vector.load %arg2[%c0_1, %c0_2] : memref<128x128xbf16, #tpu.memory_space<vmem>>, vector<128x128xbf16>
    %cst = arith.constant dense<0.000000e+00> : vector<128x128xf32>
    %3 = tpu.matmul %1, %2, %cst {dimension_numbers = #tpu.dot_dimension_numbers<[1], [0], [0], [1], [0, 0, 1, 1], [], []>} : vector<128x128xbf16>, vector<128x128xbf16>, vector<128x128xf32> -> vector<128x128xf32>
    %c0_3 = arith.constant 0 : index
    %c0_4 = arith.constant 0 : index
    %4 = vector.load %arg3[%c0_3, %c0_4] : memref<1x128xf32, #tpu.memory_space<vmem>>, vector<1x128xf32>
    %5 = vector.broadcast %4 : vector<1x128xf32> to vector<128x128xf32>
    %6 = arith.addf %3, %5 : vector<128x128xf32>
    %cst_5 = arith.constant 0.000000e+00 : f32
    %7 = vector.broadcast %cst_5 : f32 to vector<128x128xf32>
    %8 = arith.maximumf %6, %7 : vector<128x128xf32>
    %9 = arith.truncf %8 : vector<128x128xf32> to vector<128x128xbf16>
    %c0_6 = arith.constant 0 : index
    %c0_7 = arith.constant 0 : index
    %10 = vector.load %arg4[%c0_6, %c0_7] : memref<128x128xbf16, #tpu.memory_space<vmem>>, vector<128x128xbf16>
    %cst_8 = arith.constant dense<0.000000e+00> : vector<128x128xf32>
    %11 = tpu.matmul %9, %10, %cst_8 {dimension_numbers = #tpu.dot_dimension_numbers<[1], [0], [0], [1], [0, 0, 1, 1], [], []>} : vector<128x128xbf16>, vector<128x128xbf16>, vector<128x128xf32> -> vector<128x128xf32>
    %c0_9 = arith.constant 0 : index
    %c0_10 = arith.constant 0 : index
    %12 = vector.load %arg5[%c0_9, %c0_10] : memref<1x128xf32, #tpu.memory_space<vmem>>, vector<1x128xf32>
    %13 = vector.broadcast %12 : vector<1x128xf32> to vector<128x128xf32>
    %14 = arith.addf %11, %13 : vector<128x128xf32>
    %cst_11 = arith.constant 0.000000e+00 : f32
    %15 = vector.broadcast %cst_11 : f32 to vector<128x128xf32>
    %16 = arith.maximumf %14, %15 : vector<128x128xf32>
    %17 = arith.truncf %16 : vector<128x128xf32> to vector<128x128xbf16>
    %c0_12 = arith.constant 0 : index
    %c0_13 = arith.constant 0 : index
    %18 = vector.load %arg6[%c0_12, %c0_13] : memref<128x128xbf16, #tpu.memory_space<vmem>>, vector<128x128xbf16>
    %cst_14 = arith.constant dense<0.000000e+00> : vector<128x128xf32>
    %19 = tpu.matmul %17, %18, %cst_14 {dimension_numbers = #tpu.dot_dimension_numbers<[1], [0], [0], [1], [0, 0, 1, 1], [], []>} : vector<128x128xbf16>, vector<128x128xbf16>, vector<128x128xf32> -> vector<128x128xf32>
    %c0_15 = arith.constant 0 : index
    %c0_16 = arith.constant 0 : index
    %20 = vector.load %arg7[%c0_15, %c0_16] : memref<1x128xf32, #tpu.memory_space<vmem>>, vector<1x128xf32>
    %21 = vector.broadcast %20 : vector<1x128xf32> to vector<128x128xf32>
    %22 = arith.addf %19, %21 : vector<128x128xf32>
    %c0_17 = arith.constant 0 : index
    %c0_18 = arith.constant 0 : index
    %23 = vector.load %arg8[%c0_17, %c0_18] : memref<128x128xf32, #tpu.memory_space<vmem>>, vector<128x128xf32>
    tpu.vector_store %arg8[%c0_17, %c0_18], %22 {strides = array<i32>} : memref<128x128xf32, #tpu.memory_space<vmem>>, vector<128x128xf32>,
    return
  }
  func.func @transform_0(%arg0: i32) -> (i32, i32) {
    %c0_i32 = arith.constant 0 : i32
    %c0_i32_0 = arith.constant 0 : i32
    return %arg0, %c0_i32 : i32, i32
  }
  func.func @transform_1(%arg0: i32) -> (i32, i32) {
    %c0_i32 = arith.constant 0 : i32
    %c0_i32_0 = arith.constant 0 : i32
    %c0_i32_1 = arith.constant 0 : i32
    return %c0_i32, %c0_i32_0 : i32, i32
  }
  func.func @transform_2(%arg0: i32) -> (i32, i32) {
    %c0_i32 = arith.constant 0 : i32
    %c0_i32_0 = arith.constant 0 : i32
    %c0_i32_1 = arith.constant 0 : i32
    return %c0_i32, %c0_i32_0 : i32, i32
  }
  func.func @transform_3(%arg0: i32) -> (i32, i32) {
    %c0_i32 = arith.constant 0 : i32
    %c0_i32_0 = arith.constant 0 : i32
    %c0_i32_1 = arith.constant 0 : i32
    return %c0_i32, %c0_i32_0 : i32, i32
  }
  func.func @transform_4(%arg0: i32) -> (i32, i32) {
    %c0_i32 = arith.constant 0 : i32
    %c0_i32_0 = arith.constant 0 : i32
    %c0_i32_1 = arith.constant 0 : i32
    return %c0_i32, %c0_i32_0 : i32, i32
  }
  func.func @transform_5(%arg0: i32) -> (i32, i32) {
    %c0_i32 = arith.constant 0 : i32
    %c0_i32_0 = arith.constant 0 : i32
    %c0_i32_1 = arith.constant 0 : i32
    return %c0_i32, %c0_i32_0 : i32, i32
  }
  func.func @transform_6(%arg0: i32) -> (i32, i32) {
    %c0_i32 = arith.constant 0 : i32
    %c0_i32_0 = arith.constant 0 : i32
    %c0_i32_1 = arith.constant 0 : i32
    return %c0_i32, %c0_i32_0 : i32, i32
  }
  func.func @transform_7(%arg0: i32) -> (i32, i32) {
    %c0_i32 = arith.constant 0 : i32
    %c0_i32_0 = arith.constant 0 : i32
    return %arg0, %c0_i32 : i32, i32
  }
}

</mosaic_0001>

<llo_original>
// kernel: actor_critic_forward.1
$region0: #{actor_critic_forward.1}
  #allocation0 [shape = 'u32[]', space=smem, size = 0x4, offset = 0x4, fixed_abs, tag = 'smem constant byte address 0x4 - core index']
  #allocation1 [shape = 'u32[144,128]{1,0:T(1,128)}', space=vmem, size = 0x12000, scoped, tag = 'internal scratch']
  %s0 = inlined_call_operand.vmem [shape: f32[256,128], index: 0, kind: input, shape index: {}]
  %s1 = inlined_call_operand.vmem [shape: bf16[128,128], index: 1, kind: input, shape index: {}]
  %s2 = inlined_call_operand.vmem [shape: f32[1,128], index: 2, kind: input, shape index: {}]
  %s3 = inlined_call_operand.vmem [shape: bf16[128,128], index: 3, kind: input, shape index: {}]
  %s4 = inlined_call_operand.vmem [shape: f32[1,128], index: 4, kind: input, shape index: {}]
  %s5 = inlined_call_operand.vmem [shape: bf16[128,128], index: 5, kind: input, shape index: {}]
  %s6 = inlined_call_operand.vmem [shape: f32[1,128], index: 6, kind: input, shape index: {}]
  %s7 = inlined_call_operand.vmem [shape: f32[256,128], index: 7, kind: output, shape index: {}]
  %s8 = sld [smem:[#allocation0]]
  $region61: #{actor_critic_forward.1} parent=0
    _
  %s10 = ssub.s32 1, %s8
  %s11 = scalar_select 0, %s10, %s8
  loop: start=0, step=1, limit=4
  $region2: #{actor_critic_forward.1} parent=0 // loop_pre_header
    _
  $region3: #{actor_critic_forward.1} parent=0 // loop_header
    %s13 = sphi 0, %s17
    %p14 = scmp.ge.s32.totalorder %s13, 4
    %s23 = sphi 0, %s25
    %s26 = sphi 0, %s23
    %s27 = sphi 0, %s26
    %s43 = sphi 0, %s27
    %s47 = sphi 0, %s47
    %s49 = sphi 0, %s47
    %s50 = sphi 0, %s49
    %s64 = sphi 0, %s50
    %s68 = sphi 0, %s68
    %s70 = sphi 0, %s68
    %s71 = sphi 0, %s70
    %s85 = sphi 0, %s71
    %s89 = sphi 0, %s89
    %s91 = sphi 0, %s89
    %s92 = sphi 0, %s91
    %s106 = sphi 0, %s92
    %s110 = sphi 0, %s110
    %s112 = sphi 0, %s110
    %s113 = sphi 0, %s112
    %s127 = sphi 0, %s113
    %s131 = sphi 0, %s131
    %s133 = sphi 0, %s131
    %s134 = sphi 0, %s133
    %s148 = sphi 0, %s134
    %s152 = sphi 0, %s152
    %s154 = sphi 0, %s152
    %s155 = sphi 0, %s154
    %s169 = sphi 0, %s155
    %s175 = sphi 0, %s177
    %s178 = sphi 0, %s175
    %s179 = sphi 0, %s178
    %s195 = sphi 0, %s179
  $region4: #{actor_critic_forward.1} parent=0 // loop_header_branch
    %16 = sbr.rel (%p14) target = $region8
  $region5: #{actor_critic_forward.1} parent=0 // loop_body
    %s18 = ssub.s32 %s13, 1
    %s19 = ssub.s32 %s13, 2
    %s20 = sadd.s32 %s13, 1
    %s21 = ssub.s32 %s13, %s20
    %p22 = scmp.eq.s32.totalorder %s21, 0
    %s24 = sadd.s32 %s23, 1
    %s25 = scalar_select %p22, %s23, %s24
    %p28 = pneg %p22
    %p29 = scmp.eq.s32.totalorder %s13, 1
    %p30 = por %p28, %p29
    %p31 = scmp.ne.s32.totalorder %s23, %s26
    %p32 = scmp.eq.s32.totalorder %s13, 0
    %p33 = por %p31, %p32
    %p34 = scmp.ne.s32.totalorder %s23, %s26
    %p35 = scmp.eq.s32.totalorder %s18, 1
    %p36 = por %p34, %p35
    %p37 = scmp.ne.s32.totalorder %s26, %s27
    %p38 = scmp.eq.s32.totalorder %s18, 0
    %p39 = por %p37, %p38
    %p40 = scmp.ne.s32.totalorder %s26, %s27
    %p41 = scmp.eq.s32.totalorder %s19, 1
    %p42 = por %p40, %p41
    %p44 = scmp.ne.s32.totalorder %s27, %s43
    %p45 = scmp.eq.s32.totalorder %s19, 0
    %p46 = por %p44, %p45
    %s48 = sadd.s32 %s47, 1
    %p51 = scmp.eq.s32.totalorder %s13, 1
    %p52 = scmp.ne.s32.totalorder %s47, %s49
    %p53 = scmp.eq.s32.totalorder %s13, 0
    %p54 = por %p52, %p53
    %p55 = scmp.ne.s32.totalorder %s47, %s49
    %p56 = scmp.eq.s32.totalorder %s18, 1
    %p57 = por %p55, %p56
    %p58 = scmp.ne.s32.totalorder %s49, %s50
    %p59 = scmp.eq.s32.totalorder %s18, 0
    %p60 = por %p58, %p59
    %p61 = scmp.ne.s32.totalorder %s49, %s50
    %p62 = scmp.eq.s32.totalorder %s19, 1
    %p63 = por %p61, %p62
    %p65 = scmp.ne.s32.totalorder %s50, %s64
    %p66 = scmp.eq.s32.totalorder %s19, 0
    %p67 = por %p65, %p66
    %s69 = sadd.s32 %s68, 1
    %p72 = scmp.eq.s32.totalorder %s13, 1
    %p73 = scmp.ne.s32.totalorder %s68, %s70
    %p74 = scmp.eq.s32.totalorder %s13, 0
    %p75 = por %p73, %p74
    %p76 = scmp.ne.s32.totalorder %s68, %s70
    %p77 = scmp.eq.s32.totalorder %s18, 1
    %p78 = por %p76, %p77
    %p79 = scmp.ne.s32.totalorder %s70, %s71
    %p80 = scmp.eq.s32.totalorder %s18, 0
    %p81 = por %p79, %p80
    %p82 = scmp.ne.s32.totalorder %s70, %s71
    %p83 = scmp.eq.s32.totalorder %s19, 1
    %p84 = por %p82, %p83
    %p86 = scmp.ne.s32.totalorder %s71, %s85
    %p87 = scmp.eq.s32.totalorder %s19, 0
    %p88 = por %p86, %p87
    %s90 = sadd.s32 %s89, 1
    %p93 = scmp.eq.s32.totalorder %s13, 1
    %p94 = scmp.ne.s32.totalorder %s89, %s91
    %p95 = scmp.eq.s32.totalorder %s13, 0
    %p96 = por %p94, %p95
    %p97 = scmp.ne.s32.totalorder %s89, %s91
    %p98 = scmp.eq.s32.totalorder %s18, 1
    %p99 = por %p97, %p98
    %p100 = scmp.ne.s32.totalorder %s91, %s92
    %p101 = scmp.eq.s32.totalorder %s18, 0
    %p102 = por %p100, %p101
    %p103 = scmp.ne.s32.totalorder %s91, %s92
    %p104 = scmp.eq.s32.totalorder %s19, 1
    %p105 = por %p103, %p104
    %p107 = scmp.ne.s32.totalorder %s92, %s106
    %p108 = scmp.eq.s32.totalorder %s19, 0
    %p109 = por %p107, %p108
    %s111 = sadd.s32 %s110, 1
    %p114 = scmp.eq.s32.totalorder %s13, 1
    %p115 = scmp.ne.s32.totalorder %s110, %s112
    %p116 = scmp.eq.s32.totalorder %s13, 0
    %p117 = por %p115, %p116
    %p118 = scmp.ne.s32.totalorder %s110, %s112
    %p119 = scmp.eq.s32.totalorder %s18, 1
    %p120 = por %p118, %p119
    %p121 = scmp.ne.s32.totalorder %s112, %s113
    %p122 = scmp.eq.s32.totalorder %s18, 0
    %p123 = por %p121, %p122
    %p124 = scmp.ne.s32.totalorder %s112, %s113
    %p125 = scmp.eq.s32.totalorder %s19, 1
    %p126 = por %p124, %p125
    %p128 = scmp.ne.s32.totalorder %s113, %s127
    %p129 = scmp.eq.s32.totalorder %s19, 0
    %p130 = por %p128, %p129
    %s132 = sadd.s32 %s131, 1
    %p135 = scmp.eq.s32.totalorder %s13, 1
    %p136 = scmp.ne.s32.totalorder %s131, %s133
    %p137 = scmp.eq.s32.totalorder %s13, 0
    %p138 = por %p136, %p137
    %p139 = scmp.ne.s32.totalorder %s131, %s133
    %p140 = scmp.eq.s32.totalorder %s18, 1
    %p141 = por %p139, %p140
    %p142 = scmp.ne.s32.totalorder %s133, %s134
    %p143 = scmp.eq.s32.totalorder %s18, 0
    %p144 = por %p142, %p143
    %p145 = scmp.ne.s32.totalorder %s133, %s134
    %p146 = scmp.eq.s32.totalorder %s19, 1
    %p147 = por %p145, %p146
    %p149 = scmp.ne.s32.totalorder %s134, %s148
    %p150 = scmp.eq.s32.totalorder %s19, 0
    %p151 = por %p149, %p150
    %s153 = sadd.s32 %s152, 1
    %p156 = scmp.eq.s32.totalorder %s13, 1
    %p157 = scmp.ne.s32.totalorder %s152, %s154
    %p158 = scmp.eq.s32.totalorder %s13, 0
    %p159 = por %p157, %p158
    %p160 = scmp.ne.s32.totalorder %s152, %s154
    %p161 = scmp.eq.s32.totalorder %s18, 1
    %p162 = por %p160, %p161
    %p163 = scmp.ne.s32.totalorder %s154, %s155
    %p164 = scmp.eq.s32.totalorder %s18, 0
    %p165 = por %p163, %p164
    %p166 = scmp.ne.s32.totalorder %s154, %s155
    %p167 = scmp.eq.s32.totalorder %s19, 1
    %p168 = por %p166, %p167
    %p170 = scmp.ne.s32.totalorder %s155, %s169
    %p171 = scmp.eq.s32.totalorder %s19, 0
    %p172 = por %p170, %p171
    %s173 = ssub.s32 %s13, %s20
    %p174 = scmp.eq.s32.totalorder %s173, 0
    %s176 = sadd.s32 %s175, 1
    %s177 = scalar_select %p174, %s175, %s176
    %p180 = pneg %p174
    %p181 = scmp.eq.s32.totalorder %s13, 1
    %p182 = por %p180, %p181
    %p183 = scmp.ne.s32.totalorder %s175, %s178
    %p184 = scmp.eq.s32.totalorder %s13, 0
    %p185 = por %p183, %p184
    %p186 = scmp.ne.s32.totalorder %s175, %s178
    %p187 = scmp.eq.s32.totalorder %s18, 1
    %p188 = por %p186, %p187
    %p189 = scmp.ne.s32.totalorder %s178, %s179
    %p190 = scmp.eq.s32.totalorder %s18, 0
    %p191 = por %p189, %p190
    %p192 = scmp.ne.s32.totalorder %s178, %s179
    %p193 = scmp.eq.s32.totalorder %s19, 1
    %p194 = por %p192, %p193
    %p196 = scmp.ne.s32.totalorder %s179, %s195
    %p197 = scmp.eq.s32.totalorder %s19, 0
    %p198 = por %p196, %p197
    %p199 = scmp.le.s32.totalorder 1, %s13
    %p200 = scmp.lt.s32.totalorder %s13, 3
    %p201 = pnand %p199, %p200
    %p202 = pneg %p201
    // Predicated region
    $region9: #{actor_critic_forward.1} parent=5 // pred_check
      _
    $region10: #{actor_critic_forward.1} parent=5 // pred_check_branch
      %204 = sbr.rel (%p201) target = $region12
    $region11: #{actor_critic_forward.1} parent=5 // pred_region
      %s205 = ssub.s32 %s13, 1
      // Predicated region
      $region13: #{actor_critic_forward.1} parent=11 // pred_check
        %p206 = pneg %p60
      $region14: #{actor_critic_forward.1} parent=11 // pred_check_branch
        %208 = sbr.rel (%p206) target = $region16
      $region15: #{actor_critic_forward.1} parent=11 // pred_region
        _
      $region16: #{actor_critic_forward.1} parent=11 // pred_fallthru
        _
      // Predicated region
      $region17: #{actor_critic_forward.1} parent=11 // pred_check
        %p209 = pneg %p81
      $region18: #{actor_critic_forward.1} parent=11 // pred_check_branch
        %211 = sbr.rel (%p209) target = $region20
      $region19: #{actor_critic_forward.1} parent=11 // pred_region
        _
      $region20: #{actor_critic_forward.1} parent=11 // pred_fallthru
        _
      // Predicated region
      $region21: #{actor_critic_forward.1} parent=11 // pred_check
        %p212 = pneg %p102
      $region22: #{actor_critic_forward.1} parent=11 // pred_check_branch
        %214 = sbr.rel (%p212) target = $region24
      $region23: #{actor_critic_forward.1} parent=11 // pred_region
        _
      $region24: #{actor_critic_forward.1} parent=11 // pred_fallthru
        _
      // Predicated region
      $region25: #{actor_critic_forward.1} parent=11 // pred_check
        %p215 = pneg %p123
      $region26: #{actor_critic_forward.1} parent=11 // pred_check_branch
        %217 = sbr.rel (%p215) target = $region28
      $region27: #{actor_critic_forward.1} parent=11 // pred_region
        _
      $region28: #{actor_critic_forward.1} parent=11 // pred_fallthru
        _
      // Predicated region
      $region29: #{actor_critic_forward.1} parent=11 // pred_check
        %p218 = pneg %p144
      $region30: #{actor_critic_forward.1} parent=11 // pred_check_branch
        %220 = sbr.rel (%p218) target = $region32
      $region31: #{actor_critic_forward.1} parent=11 // pred_region
        _
      $region32: #{actor_critic_forward.1} parent=11 // pred_fallthru
        _
      // Predicated region
      $region33: #{actor_critic_forward.1} parent=11 // pred_check
        %p221 = pneg %p165
      $region34: #{actor_critic_forward.1} parent=11 // pred_check_branch
        %223 = sbr.rel (%p221) target = $region36
      $region35: #{actor_critic_forward.1} parent=11 // pred_region
        _
      $region36: #{actor_critic_forward.1} parent=11 // pred_fallthru
        _
    $region12: #{actor_critic_forward.1} parent=5 // pred_fallthru
      _
    %p224 = scmp.lt.s32.totalorder %s13, 2
    // Predicated region
    $region37: #{actor_critic_forward.1} parent=5 // pred_check
      %p225 = pneg %p224
    $region38: #{actor_critic_forward.1} parent=5 // pred_check_branch
      %227 = sbr.rel (%p225) target = $region40
    $region39: #{actor_critic_forward.1} parent=5 // pred_region
      // Predicated region
      $region41: #{actor_critic_forward.1} parent=39 // pred_check
        %p228 = pneg %p33
      $region42: #{actor_critic_forward.1} parent=39 // pred_check_branch
        %230 = sbr.rel (%p228) target = $region44
      $region43: #{actor_critic_forward.1} parent=39 // pred_region
        %s231 = smul.u32 16, %s13
        %p232 = scmp.lt.s32.totalorder %s231, 31
        %s233 = scalar_select %p232, %s231, 31
        %s234 = smul.addr %s233, 8
        %s235 = scalar_lea.vmem %s0, %s234
        %s236 = smul.u32 16, %s13
      $region44: #{actor_critic_forward.1} parent=39 // pred_fallthru
        _
    $region40: #{actor_critic_forward.1} parent=5 // pred_fallthru
      _
    %p237 = scmp.le.s32.totalorder 1, %s13
    %p238 = scmp.lt.s32.totalorder %s13, 3
    %p239 = pnand %p237, %p238
    %p240 = pneg %p239
    // Predicated region
    $region45: #{actor_critic_forward.1} parent=5 // pred_check
      _
    $region46: #{actor_critic_forward.1} parent=5 // pred_check_branch
      %242 = sbr.rel (%p239) target = $region48
    $region47: #{actor_critic_forward.1} parent=5 // pred_region
      %s243 = ssub.s32 %s13, 1
      %s244 = smul.u32 16, %s18
      %p245 = scmp.lt.s32.totalorder %s244, 31
      %s246 = scalar_select %p245, %s244, 31
      %s247 = smul.addr %s246, 8
      %s248 = scalar_lea.vmem %s0, %s247
      %p249 = pneg %p39
      %p250 = pneg %p36
      %p251 = pneg %p60
      %p252 = pneg %p57
      %p253 = pneg %p81
      %p254 = pneg %p78
      %p255 = pneg %p102
      %p256 = pneg %p99
      %p257 = pneg %p123
      %p258 = pneg %p120
      %p259 = pneg %p144
      %p260 = pneg %p141
      %p261 = pneg %p165
      %p262 = pneg %p162
      %p263 = pneg %p191
      %p264 = pneg %p188
      %s265 = smul.u32 16, %s18
      %p266 = scmp.lt.s32.totalorder %s265, 31
      %s267 = scalar_select %p266, %s265, 31
      %s268 = smul.addr %s267, 8
      %s269 = scalar_lea.vmem %s7, %s268
      %s270 = smul.u32 16, %s18
      %p271 = scmp.lt.s32.totalorder %s270, 31
      %s272 = scalar_select %p271, %s270, 31
      %s273 = smul.addr %s272, 8
      %s274 = scalar_lea.vmem %s0, %s273
      %s275 = smul.u32 16, %s18
      %s276 = smul.u32 16, %s18
      %p277 = scmp.lt.s32.totalorder %s276, 31
      %s278 = scalar_select %p277, %s276, 31
      %s279 = smul.addr %s278, 8
      %s280 = scalar_lea.vmem %s7, %s279
      %s281 = smul.u32 16, %s18
      %v283 = vld [vmem:[%s274] sm:$0xff]
      %v284 = vld [vmem:[%s274 + $0x8] sm:$0xff]
      %v285 = vld [vmem:[%s274 + $0x10] sm:$0xff]
      %v286 = vld [vmem:[%s274 + $0x18] sm:$0xff]
      %v287 = vld [vmem:[%s274 + $0x20] sm:$0xff]
      %v288 = vld [vmem:[%s274 + $0x28] sm:$0xff]
      %v289 = vld [vmem:[%s274 + $0x30] sm:$0xff]
      %v290 = vld [vmem:[%s274 + $0x38] sm:$0xff]
      %v291 = vld [vmem:[%s274 + $0x40] sm:$0xff]
      %v292 = vld [vmem:[%s274 + $0x48] sm:$0xff]
      %v293 = vld [vmem:[%s274 + $0x50] sm:$0xff]
      %v294 = vld [vmem:[%s274 + $0x58] sm:$0xff]
      %v295 = vld [vmem:[%s274 + $0x60] sm:$0xff]
      %v296 = vld [vmem:[%s274 + $0x68] sm:$0xff]
      %v297 = vld [vmem:[%s274 + $0x70] sm:$0xff]
      %v298 = vld [vmem:[%s274 + $0x78] sm:$0xff]
      %v299 = vpack.c.bf16 %v284, %v283
      %v300 = vpack.c.bf16 %v286, %v285
      %v301 = vpack.c.bf16 %v288, %v287
      %v302 = vpack.c.bf16 %v290, %v289
      %v303 = vpack.c.bf16 %v292, %v291
      %v304 = vpack.c.bf16 %v294, %v293
      %v305 = vpack.c.bf16 %v296, %v295
      %v306 = vpack.c.bf16 %v298, %v297
      %v307 = vld [vmem:[%s1] sm:$0xf]
      %v308 = vld [vmem:[%s1 + $0x4] sm:$0xf]
      %v309 = vld [vmem:[%s1 + $0x8] sm:$0xf]
      %v310 = vld [vmem:[%s1 + $0xc] sm:$0xf]
      %v311 = vld [vmem:[%s1 + $0x10] sm:$0xf]
      %v312 = vld [vmem:[%s1 + $0x14] sm:$0xf]
      %v313 = vld [vmem:[%s1 + $0x18] sm:$0xf]
      %v314 = vld [vmem:[%s1 + $0x1c] sm:$0xf]
      %v315 = vld [vmem:[%s1 + $0x20] sm:$0xf]
      %v316 = vld [vmem:[%s1 + $0x24] sm:$0xf]
      %v317 = vld [vmem:[%s1 + $0x28] sm:$0xf]
      %v318 = vld [vmem:[%s1 + $0x2c] sm:$0xf]
      %v319 = vld [vmem:[%s1 + $0x30] sm:$0xf]
      %v320 = vld [vmem:[%s1 + $0x34] sm:$0xf]
      %v321 = vld [vmem:[%s1 + $0x38] sm:$0xf]
      %v322 = vld [vmem:[%s1 + $0x3c] sm:$0xf]
      %v323 = vld [vmem:[%s2] sm:$0x1]
      %v325 = vlaneseq
      %v326 = vshrl.u32 %v325, 7
      %v327 = vsub.s32 0, %v326
      %v328 = vrot.slane %v323, %v327
      %v346 = vunpack.c.l.b16 %v307
      %v347 = vunpack.c.l.b16 %v308
      %v348 = vunpack.c.l.b16 %v309
      %v349 = vunpack.c.l.b16 %v310
      %v350 = vunpack.c.l.b16 %v311
      %v351 = vunpack.c.l.b16 %v312
      %v352 = vunpack.c.l.b16 %v313
      %v353 = vunpack.c.l.b16 %v314
      %v354 = vunpack.c.l.b16 %v315
      %v355 = vunpack.c.l.b16 %v316
      %v356 = vunpack.c.l.b16 %v317
      %v357 = vunpack.c.l.b16 %v318
      %v358 = vunpack.c.l.b16 %v319
      %v359 = vunpack.c.l.b16 %v320
      %v360 = vunpack.c.l.b16 %v321
      %v361 = vunpack.c.l.b16 %v322
      %v362 = vpack.c.b16 %v347, %v346
      %v363 = vpack.c.b16 %v349, %v348
      %v364 = vpack.c.b16 %v351, %v350
      %v365 = vpack.c.b16 %v353, %v352
      %v366 = vpack.c.b16 %v355, %v354
      %v367 = vpack.c.b16 %v357, %v356
      %v368 = vpack.c.b16 %v359, %v358
      %v369 = vpack.c.b16 %v361, %v360
      %378 = vmatprep.subr.bf16.mxu0 0
      %379 = vmatpush1.bf16.msra.mxu0 %v369
      %380 = vmatprep.subr.bf16.mxu0 0
      %381 = vmatpush1.bf16.msra.mxu0 %v368
      %382 = vmatprep.subr.bf16.mxu0 0
      %383 = vmatpush1.bf16.msra.mxu0 %v367
      %384 = vmatprep.subr.bf16.mxu0 0
      %385 = vmatpush1.bf16.msra.mxu0 %v366
      %386 = vmatprep.subr.bf16.mxu0 0
      %387 = vmatpush1.bf16.msra.mxu0 %v365
      %388 = vmatprep.subr.bf16.mxu0 0
      %389 = vmatpush1.bf16.msra.mxu0 %v364
      %390 = vmatprep.subr.bf16.mxu0 0
      %391 = vmatpush1.bf16.msra.mxu0 %v363
      %392 = vmatprep.subr.bf16.mxu0 0
      %393 = vmatpush1.bf16.msra.mxu0 %v362
      %394 = vmatprep.subr.bf16.mxu0 0
      %395 = vmatpush2.bf16.msra.mxu0 0
      %396 = vmatprep.subr.bf16.mxu0 0
      %397 = vmatpush2.bf16.msra.mxu0 0
      %398 = vmatprep.subr.bf16.mxu0 0
      %399 = vmatpush2.bf16.msra.mxu0 0
      %400 = vmatprep.subr.bf16.mxu0 0
      %401 = vmatpush2.bf16.msra.mxu0 0
      %402 = vmatprep.subr.bf16.mxu0 0
      %403 = vmatpush2.bf16.msra.mxu0 0
      %404 = vmatprep.subr.bf16.mxu0 0
      %405 = vmatpush2.bf16.msra.mxu0 0
      %406 = vmatprep.subr.bf16.mxu0 0
      %407 = vmatpush2.bf16.msra.mxu0 0
      %408 = vmatprep.subr.bf16.mxu0 0
      %409 = vmatpush2.bf16.msra.mxu0 0
      %410 = vmatprep.mubr.bf16.mxu0 0
      %411 = vmatmul.mubr.bf16.gmra.mxu0 %v299
      %v412 = vpop.f32.mrf.mxu0
      %v413 = vadd.f32 %v328, %v412
      %v414 = vpop.f32.mrf.mxu0
      %v415 = vpop.f32.mrf.mxu0
      %v416 = vadd.f32 %v328, %v415
      %v417 = vpop.f32.mrf.mxu0
      %418 = vmatprep.mubr.bf16.mxu0 0
      %419 = vmatmul.mubr.bf16.gmra.mxu0 %v300
      %v420 = vpop.f32.mrf.mxu0
      %v421 = vadd.f32 %v328, %v420
      %v422 = vpop.f32.mrf.mxu0
      %v423 = vpop.f32.mrf.mxu0
      %v424 = vadd.f32 %v328, %v423
      %v425 = vpop.f32.mrf.mxu0
      %426 = vmatprep.mubr.bf16.mxu0 0
      %427 = vmatmul.mubr.bf16.gmra.mxu0 %v301
      %v428 = vpop.f32.mrf.mxu0
      %v429 = vadd.f32 %v328, %v428
      %v430 = vpop.f32.mrf.mxu0
      %v431 = vpop.f32.mrf.mxu0
      %v432 = vadd.f32 %v328, %v431
      %v433 = vpop.f32.mrf.mxu0
      %434 = vmatprep.mubr.bf16.mxu0 0
      %435 = vmatmul.mubr.bf16.gmra.mxu0 %v302
      %v436 = vpop.f32.mrf.mxu0
      %v437 = vadd.f32 %v328, %v436
      %v438 = vpop.f32.mrf.mxu0
      %v439 = vpop.f32.mrf.mxu0
      %v440 = vadd.f32 %v328, %v439
      %v441 = vpop.f32.mrf.mxu0
      %442 = vmatprep.mubr.bf16.mxu0 0
      %443 = vmatmul.mubr.bf16.gmra.mxu0 %v303
      %v444 = vpop.f32.mrf.mxu0
      %v445 = vadd.f32 %v328, %v444
      %v446 = vpop.f32.mrf.mxu0
      %v447 = vpop.f32.mrf.mxu0
      %v448 = vadd.f32 %v328, %v447
      %v449 = vpop.f32.mrf.mxu0
      %450 = vmatprep.mubr.bf16.mxu0 0
      %451 = vmatmul.mubr.bf16.gmra.mxu0 %v304
      %v452 = vpop.f32.mrf.mxu0
      %v453 = vadd.f32 %v328, %v452
      %v454 = vpop.f32.mrf.mxu0
      %v455 = vpop.f32.mrf.mxu0
      %v456 = vadd.f32 %v328, %v455
      %v457 = vpop.f32.mrf.mxu0
      %458 = vmatprep.mubr.bf16.mxu0 0
      %459 = vmatmul.mubr.bf16.gmra.mxu0 %v305
      %v460 = vpop.f32.mrf.mxu0
      %v461 = vadd.f32 %v328, %v460
      %v462 = vpop.f32.mrf.mxu0
      %v463 = vpop.f32.mrf.mxu0
      %v464 = vadd.f32 %v328, %v463
      %v465 = vpop.f32.mrf.mxu0
      %466 = vmatprep.mubr.bf16.mxu0 0
      %467 = vmatmul.mubr.bf16.gmra.mxu0 %v306
      %v468 = vpop.f32.mrf.mxu0
      %v469 = vadd.f32 %v328, %v468
      %v470 = vpop.f32.mrf.mxu0
      %v471 = vpop.f32.mrf.mxu0
      %v472 = vadd.f32 %v328, %v471
      %v473 = vpop.f32.mrf.mxu0
      %474 = vdwg.mxu0
      %v475 = vmax.f32 %v413, 0.0
      %v476 = vmax.f32 %v416, 0.0
      %v477 = vmax.f32 %v421, 0.0
      %v478 = vmax.f32 %v424, 0.0
      %v479 = vmax.f32 %v429, 0.0
      %v480 = vmax.f32 %v432, 0.0
      %v481 = vmax.f32 %v437, 0.0
      %v482 = vmax.f32 %v440, 0.0
      %v483 = vmax.f32 %v445, 0.0
      %v484 = vmax.f32 %v448, 0.0
      %v485 = vmax.f32 %v453, 0.0
      %v486 = vmax.f32 %v456, 0.0
      %v487 = vmax.f32 %v461, 0.0
      %v488 = vmax.f32 %v464, 0.0
      %v489 = vmax.f32 %v469, 0.0
      %v490 = vmax.f32 %v472, 0.0
      %v491 = vpack.c.bf16 %v476, %v475
      %v492 = vpack.c.bf16 %v478, %v477
      %v493 = vpack.c.bf16 %v480, %v479
      %v494 = vpack.c.bf16 %v482, %v481
      %v495 = vpack.c.bf16 %v484, %v483
      %v496 = vpack.c.bf16 %v486, %v485
      %v497 = vpack.c.bf16 %v488, %v487
      %v498 = vpack.c.bf16 %v490, %v489
      %v499 = vld [vmem:[%s3] sm:$0xf]
      %v500 = vld [vmem:[%s3 + $0x4] sm:$0xf]
      %v501 = vld [vmem:[%s3 + $0x8] sm:$0xf]
      %v502 = vld [vmem:[%s3 + $0xc] sm:$0xf]
      %v503 = vld [vmem:[%s3 + $0x10] sm:$0xf]
      %v504 = vld [vmem:[%s3 + $0x14] sm:$0xf]
      %v505 = vld [vmem:[%s3 + $0x18] sm:$0xf]
      %v506 = vld [vmem:[%s3 + $0x1c] sm:$0xf]
      %v507 = vld [vmem:[%s3 + $0x20] sm:$0xf]
      %v508 = vld [vmem:[%s3 + $0x24] sm:$0xf]
      %v509 = vld [vmem:[%s3 + $0x28] sm:$0xf]
      %v510 = vld [vmem:[%s3 + $0x2c] sm:$0xf]
      %v511 = vld [vmem:[%s3 + $0x30] sm:$0xf]
      %v512 = vld [vmem:[%s3 + $0x34] sm:$0xf]
      %v513 = vld [vmem:[%s3 + $0x38] sm:$0xf]
      %v514 = vld [vmem:[%s3 + $0x3c] sm:$0xf]
      %v515 = vld [vmem:[%s4] sm:$0x1]
      %v517 = vlaneseq
      %v518 = vshrl.u32 %v517, 7
      %v519 = vsub.s32 0, %v518
      %v520 = vrot.slane %v515, %v519
      %v538 = vunpack.c.l.b16 %v499
      %v539 = vunpack.c.l.b16 %v500
      %v540 = vunpack.c.l.b16 %v501
      %v541 = vunpack.c.l.b16 %v502
      %v542 = vunpack.c.l.b16 %v503
      %v543 = vunpack.c.l.b16 %v504
      %v544 = vunpack.c.l.b16 %v505
      %v545 = vunpack.c.l.b16 %v506
      %v546 = vunpack.c.l.b16 %v507
      %v547 = vunpack.c.l.b16 %v508
      %v548 = vunpack.c.l.b16 %v509
      %v549 = vunpack.c.l.b16 %v510
      %v550 = vunpack.c.l.b16 %v511
      %v551 = vunpack.c.l.b16 %v512
      %v552 = vunpack.c.l.b16 %v513
      %v553 = vunpack.c.l.b16 %v514
      %v554 = vpack.c.b16 %v539, %v538
      %v555 = vpack.c.b16 %v541, %v540
      %v556 = vpack.c.b16 %v543, %v542
      %v557 = vpack.c.b16 %v545, %v544
      %v558 = vpack.c.b16 %v547, %v546
      %v559 = vpack.c.b16 %v549, %v548
      %v560 = vpack.c.b16 %v551, %v550
      %v561 = vpack.c.b16 %v553, %v552
      %570 = vmatprep.subr.bf16.mxu0 0
      %571 = vmatpush1.bf16.msra.mxu0 %v561
      %572 = vmatprep.subr.bf16.mxu0 0
      %573 = vmatpush1.bf16.msra.mxu0 %v560
      %574 = vmatprep.subr.bf16.mxu0 0
      %575 = vmatpush1.bf16.msra.mxu0 %v559
      %576 = vmatprep.subr.bf16.mxu0 0
      %577 = vmatpush1.bf16.msra.mxu0 %v558
      %578 = vmatprep.subr.bf16.mxu0 0
      %579 = vmatpush1.bf16.msra.mxu0 %v557
      %580 = vmatprep.subr.bf16.mxu0 0
      %581 = vmatpush1.bf16.msra.mxu0 %v556
      %582 = vmatprep.subr.bf16.mxu0 0
      %583 = vmatpush1.bf16.msra.mxu0 %v555
      %584 = vmatprep.subr.bf16.mxu0 0
      %585 = vmatpush1.bf16.msra.mxu0 %v554
      %586 = vmatprep.subr.bf16.mxu0 0
      %587 = vmatpush2.bf16.msra.mxu0 0
      %588 = vmatprep.subr.bf16.mxu0 0
      %589 = vmatpush2.bf16.msra.mxu0 0
      %590 = vmatprep.subr.bf16.mxu0 0
      %591 = vmatpush2.bf16.msra.mxu0 0
      %592 = vmatprep.subr.bf16.mxu0 0
      %593 = vmatpush2.bf16.msra.mxu0 0
      %594 = vmatprep.subr.bf16.mxu0 0
      %595 = vmatpush2.bf16.msra.mxu0 0
      %596 = vmatprep.subr.bf16.mxu0 0
      %597 = vmatpush2.bf16.msra.mxu0 0
      %598 = vmatprep.subr.bf16.mxu0 0
      %599 = vmatpush2.bf16.msra.mxu0 0
      %600 = vmatprep.subr.bf16.mxu0 0
      %601 = vmatpush2.bf16.msra.mxu0 0
      %602 = vmatprep.mubr.bf16.mxu0 0
      %603 = vmatmul.mubr.bf16.gmra.mxu0 %v491
      %v604 = vpop.f32.mrf.mxu0
      %v605 = vadd.f32 %v520, %v604
      %v606 = vpop.f32.mrf.mxu0
      %v607 = vpop.f32.mrf.mxu0
      %v608 = vadd.f32 %v520, %v607
      %v609 = vpop.f32.mrf.mxu0
      %610 = vmatprep.mubr.bf16.mxu0 0
      %611 = vmatmul.mubr.bf16.gmra.mxu0 %v492
      %v612 = vpop.f32.mrf.mxu0
      %v613 = vadd.f32 %v520, %v612
      %v614 = vpop.f32.mrf.mxu0
      %v615 = vpop.f32.mrf.mxu0
      %v616 = vadd.f32 %v520, %v615
      %v617 = vpop.f32.mrf.mxu0
      %618 = vmatprep.mubr.bf16.mxu0 0
      %619 = vmatmul.mubr.bf16.gmra.mxu0 %v493
      %v620 = vpop.f32.mrf.mxu0
      %v621 = vadd.f32 %v520, %v620
      %v622 = vpop.f32.mrf.mxu0
      %v623 = vpop.f32.mrf.mxu0
      %v624 = vadd.f32 %v520, %v623
      %v625 = vpop.f32.mrf.mxu0
      %626 = vmatprep.mubr.bf16.mxu0 0
      %627 = vmatmul.mubr.bf16.gmra.mxu0 %v494
      %v628 = vpop.f32.mrf.mxu0
      %v629 = vadd.f32 %v520, %v628
      %v630 = vpop.f32.mrf.mxu0
      %v631 = vpop.f32.mrf.mxu0
      %v632 = vadd.f32 %v520, %v631
      %v633 = vpop.f32.mrf.mxu0
      %634 = vmatprep.mubr.bf16.mxu0 0
      %635 = vmatmul.mubr.bf16.gmra.mxu0 %v495
      %v636 = vpop.f32.mrf.mxu0
      %v637 = vadd.f32 %v520, %v636
      %v638 = vpop.f32.mrf.mxu0
      %v639 = vpop.f32.mrf.mxu0
      %v640 = vadd.f32 %v520, %v639
      %v641 = vpop.f32.mrf.mxu0
      %642 = vmatprep.mubr.bf16.mxu0 0
      %643 = vmatmul.mubr.bf16.gmra.mxu0 %v496
      %v644 = vpop.f32.mrf.mxu0
      %v645 = vadd.f32 %v520, %v644
      %v646 = vpop.f32.mrf.mxu0
      %v647 = vpop.f32.mrf.mxu0
      %v648 = vadd.f32 %v520, %v647
      %v649 = vpop.f32.mrf.mxu0
      %650 = vmatprep.mubr.bf16.mxu0 0
      %651 = vmatmul.mubr.bf16.gmra.mxu0 %v497
      %v652 = vpop.f32.mrf.mxu0
      %v653 = vadd.f32 %v520, %v652
      %v654 = vpop.f32.mrf.mxu0
      %v655 = vpop.f32.mrf.mxu0
      %v656 = vadd.f32 %v520, %v655
      %v657 = vpop.f32.mrf.mxu0
      %658 = vmatprep.mubr.bf16.mxu0 0
      %659 = vmatmul.mubr.bf16.gmra.mxu0 %v498
      %v660 = vpop.f32.mrf.mxu0
      %v661 = vadd.f32 %v520, %v660
      %v662 = vpop.f32.mrf.mxu0
      %v663 = vpop.f32.mrf.mxu0
      %v664 = vadd.f32 %v520, %v663
      %v665 = vpop.f32.mrf.mxu0
      %666 = vdwg.mxu0
      %v667 = vmax.f32 %v605, 0.0
      %v668 = vmax.f32 %v608, 0.0
      %v669 = vmax.f32 %v613, 0.0
      %v670 = vmax.f32 %v616, 0.0
      %v671 = vmax.f32 %v621, 0.0
      %v672 = vmax.f32 %v624, 0.0
      %v673 = vmax.f32 %v629, 0.0
      %v674 = vmax.f32 %v632, 0.0
      %v675 = vmax.f32 %v637, 0.0
      %v676 = vmax.f32 %v640, 0.0
      %v677 = vmax.f32 %v645, 0.0
      %v678 = vmax.f32 %v648, 0.0
      %v679 = vmax.f32 %v653, 0.0
      %v680 = vmax.f32 %v656, 0.0
      %v681 = vmax.f32 %v661, 0.0
      %v682 = vmax.f32 %v664, 0.0
      %v683 = vpack.c.bf16 %v668, %v667
      %v684 = vpack.c.bf16 %v670, %v669
      %v685 = vpack.c.bf16 %v672, %v671
      %v686 = vpack.c.bf16 %v674, %v673
      %v687 = vpack.c.bf16 %v676, %v675
      %v688 = vpack.c.bf16 %v678, %v677
      %v689 = vpack.c.bf16 %v680, %v679
      %v690 = vpack.c.bf16 %v682, %v681
      %v691 = vld [vmem:[%s5] sm:$0xf]
      %v692 = vld [vmem:[%s5 + $0x4] sm:$0xf]
      %v693 = vld [vmem:[%s5 + $0x8] sm:$0xf]
      %v694 = vld [vmem:[%s5 + $0xc] sm:$0xf]
      %v695 = vld [vmem:[%s5 + $0x10] sm:$0xf]
      %v696 = vld [vmem:[%s5 + $0x14] sm:$0xf]
      %v697 = vld [vmem:[%s5 + $0x18] sm:$0xf]
      %v698 = vld [vmem:[%s5 + $0x1c] sm:$0xf]
      %v699 = vld [vmem:[%s5 + $0x20] sm:$0xf]
      %v700 = vld [vmem:[%s5 + $0x24] sm:$0xf]
      %v701 = vld [vmem:[%s5 + $0x28] sm:$0xf]
      %v702 = vld [vmem:[%s5 + $0x2c] sm:$0xf]
      %v703 = vld [vmem:[%s5 + $0x30] sm:$0xf]
      %v704 = vld [vmem:[%s5 + $0x34] sm:$0xf]
      %v705 = vld [vmem:[%s5 + $0x38] sm:$0xf]
      %v706 = vld [vmem:[%s5 + $0x3c] sm:$0xf]
      %v707 = vld [vmem:[%s6] sm:$0x1]
      %v709 = vlaneseq
      %v710 = vshrl.u32 %v709, 7
      %v711 = vsub.s32 0, %v710
      %v712 = vrot.slane %v707, %v711
      %v730 = vunpack.c.l.b16 %v691
      %v731 = vunpack.c.l.b16 %v692
      %v732 = vunpack.c.l.b16 %v693
      %v733 = vunpack.c.l.b16 %v694
      %v734 = vunpack.c.l.b16 %v695
      %v735 = vunpack.c.l.b16 %v696
      %v736 = vunpack.c.l.b16 %v697
      %v737 = vunpack.c.l.b16 %v698
      %v738 = vunpack.c.l.b16 %v699
      %v739 = vunpack.c.l.b16 %v700
      %v740 = vunpack.c.l.b16 %v701
      %v741 = vunpack.c.l.b16 %v702
      %v742 = vunpack.c.l.b16 %v703
      %v743 = vunpack.c.l.b16 %v704
      %v744 = vunpack.c.l.b16 %v705
      %v745 = vunpack.c.l.b16 %v706
      %v746 = vpack.c.b16 %v731, %v730
      %v747 = vpack.c.b16 %v733, %v732
      %v748 = vpack.c.b16 %v735, %v734
      %v749 = vpack.c.b16 %v737, %v736
      %v750 = vpack.c.b16 %v739, %v738
      %v751 = vpack.c.b16 %v741, %v740
      %v752 = vpack.c.b16 %v743, %v742
      %v753 = vpack.c.b16 %v745, %v744
      %762 = vmatprep.subr.bf16.mxu0 0
      %763 = vmatpush1.bf16.msra.mxu0 %v753
      %764 = vmatprep.subr.bf16.mxu0 0
      %765 = vmatpush1.bf16.msra.mxu0 %v752
      %766 = vmatprep.subr.bf16.mxu0 0
      %767 = vmatpush1.bf16.msra.mxu0 %v751
      %768 = vmatprep.subr.bf16.mxu0 0
      %769 = vmatpush1.bf16.msra.mxu0 %v750
      %770 = vmatprep.subr.bf16.mxu0 0
      %771 = vmatpush1.bf16.msra.mxu0 %v749
      %772 = vmatprep.subr.bf16.mxu0 0
      %773 = vmatpush1.bf16.msra.mxu0 %v748
      %774 = vmatprep.subr.bf16.mxu0 0
      %775 = vmatpush1.bf16.msra.mxu0 %v747
      %776 = vmatprep.subr.bf16.mxu0 0
      %777 = vmatpush1.bf16.msra.mxu0 %v746
      %778 = vmatprep.subr.bf16.mxu0 0
      %779 = vmatpush2.bf16.msra.mxu0 0
      %780 = vmatprep.subr.bf16.mxu0 0
      %781 = vmatpush2.bf16.msra.mxu0 0
      %782 = vmatprep.subr.bf16.mxu0 0
      %783 = vmatpush2.bf16.msra.mxu0 0
      %784 = vmatprep.subr.bf16.mxu0 0
      %785 = vmatpush2.bf16.msra.mxu0 0
      %786 = vmatprep.subr.bf16.mxu0 0
      %787 = vmatpush2.bf16.msra.mxu0 0
      %788 = vmatprep.subr.bf16.mxu0 0
      %789 = vmatpush2.bf16.msra.mxu0 0
      %790 = vmatprep.subr.bf16.mxu0 0
      %791 = vmatpush2.bf16.msra.mxu0 0
      %792 = vmatprep.subr.bf16.mxu0 0
      %793 = vmatpush2.bf16.msra.mxu0 0
      %794 = vmatprep.mubr.bf16.mxu0 0
      %795 = vmatmul.mubr.bf16.gmra.mxu0 %v683
      %v796 = vpop.f32.mrf.mxu0
      %v797 = vadd.f32 %v712, %v796
      %v798 = vpop.f32.mrf.mxu0
      %v799 = vpop.f32.mrf.mxu0
      %v800 = vadd.f32 %v712, %v799
      %v801 = vpop.f32.mrf.mxu0
      %802 = vmatprep.mubr.bf16.mxu0 0
      %803 = vmatmul.mubr.bf16.gmra.mxu0 %v684
      %v804 = vpop.f32.mrf.mxu0
      %v805 = vadd.f32 %v712, %v804
      %v806 = vpop.f32.mrf.mxu0
      %v807 = vpop.f32.mrf.mxu0
      %v808 = vadd.f32 %v712, %v807
      %v809 = vpop.f32.mrf.mxu0
      %810 = vmatprep.mubr.bf16.mxu0 0
      %811 = vmatmul.mubr.bf16.gmra.mxu0 %v685
      %v812 = vpop.f32.mrf.mxu0
      %v813 = vadd.f32 %v712, %v812
      %v814 = vpop.f32.mrf.mxu0
      %v815 = vpop.f32.mrf.mxu0
      %v816 = vadd.f32 %v712, %v815
      %v817 = vpop.f32.mrf.mxu0
      %818 = vmatprep.mubr.bf16.mxu0 0
      %819 = vmatmul.mubr.bf16.gmra.mxu0 %v686
      %v820 = vpop.f32.mrf.mxu0
      %v821 = vadd.f32 %v712, %v820
      %v822 = vpop.f32.mrf.mxu0
      %v823 = vpop.f32.mrf.mxu0
      %v824 = vadd.f32 %v712, %v823
      %v825 = vpop.f32.mrf.mxu0
      %826 = vmatprep.mubr.bf16.mxu0 0
      %827 = vmatmul.mubr.bf16.gmra.mxu0 %v687
      %v828 = vpop.f32.mrf.mxu0
      %v829 = vadd.f32 %v712, %v828
      %v830 = vpop.f32.mrf.mxu0
      %v831 = vpop.f32.mrf.mxu0
      %v832 = vadd.f32 %v712, %v831
      %v833 = vpop.f32.mrf.mxu0
      %834 = vmatprep.mubr.bf16.mxu0 0
      %835 = vmatmul.mubr.bf16.gmra.mxu0 %v688
      %v836 = vpop.f32.mrf.mxu0
      %v837 = vadd.f32 %v712, %v836
      %v838 = vpop.f32.mrf.mxu0
      %v839 = vpop.f32.mrf.mxu0
      %v840 = vadd.f32 %v712, %v839
      %v841 = vpop.f32.mrf.mxu0
      %842 = vmatprep.mubr.bf16.mxu0 0
      %843 = vmatmul.mubr.bf16.gmra.mxu0 %v689
      %v844 = vpop.f32.mrf.mxu0
      %v845 = vadd.f32 %v712, %v844
      %v846 = vpop.f32.mrf.mxu0
      %v847 = vpop.f32.mrf.mxu0
      %v848 = vadd.f32 %v712, %v847
      %v849 = vpop.f32.mrf.mxu0
      %850 = vmatprep.mubr.bf16.mxu0 0
      %851 = vmatmul.mubr.bf16.gmra.mxu0 %v690
      %v852 = vpop.f32.mrf.mxu0
      %v853 = vadd.f32 %v712, %v852
      %v854 = vpop.f32.mrf.mxu0
      %v855 = vpop.f32.mrf.mxu0
      %v856 = vadd.f32 %v712, %v855
      %v857 = vpop.f32.mrf.mxu0
      %858 = vdwg.mxu0
      %859 = vst [vmem:[%s280] sm:$0xff] %v797
      %860 = vst [vmem:[%s280 + $0x8] sm:$0xff] %v800
      %861 = vst [vmem:[%s280 + $0x10] sm:$0xff] %v805
      %862 = vst [vmem:[%s280 + $0x18] sm:$0xff] %v808
      %863 = vst [vmem:[%s280 + $0x20] sm:$0xff] %v813
      %864 = vst [vmem:[%s280 + $0x28] sm:$0xff] %v816
      %865 = vst [vmem:[%s280 + $0x30] sm:$0xff] %v821
      %866 = vst [vmem:[%s280 + $0x38] sm:$0xff] %v824
      %867 = vst [vmem:[%s280 + $0x40] sm:$0xff] %v829
      %868 = vst [vmem:[%s280 + $0x48] sm:$0xff] %v832
      %869 = vst [vmem:[%s280 + $0x50] sm:$0xff] %v837
      %870 = vst [vmem:[%s280 + $0x58] sm:$0xff] %v840
      %871 = vst [vmem:[%s280 + $0x60] sm:$0xff] %v845
      %872 = vst [vmem:[%s280 + $0x68] sm:$0xff] %v848
      %873 = vst [vmem:[%s280 + $0x70] sm:$0xff] %v853
      %874 = vst [vmem:[%s280 + $0x78] sm:$0xff] %v856
      %s875 = smul.u32 16, %s18
      %p876 = scmp.lt.s32.totalorder %s875, 31
      %s877 = scalar_select %p876, %s875, 31
      %s878 = smul.addr %s877, 8
      %s879 = scalar_lea.vmem %s7, %s878
      // Predicated region
      $region49: #{actor_critic_forward.1} parent=47 // pred_check
        %p880 = pneg %p188
      $region50: #{actor_critic_forward.1} parent=47 // pred_check_branch
        %882 = sbr.rel (%p880) target = $region52
      $region51: #{actor_critic_forward.1} parent=47 // pred_region
        %s883 = smul.u32 16, %s18
      $region52: #{actor_critic_forward.1} parent=47 // pred_fallthru
        _
    $region48: #{actor_critic_forward.1} parent=5 // pred_fallthru
      _
    %p884 = scmp.le.s32.totalorder 2, %s13
    // Predicated region
    $region53: #{actor_critic_forward.1} parent=5 // pred_check
      %p885 = pneg %p884
    $region54: #{actor_critic_forward.1} parent=5 // pred_check_branch
      %887 = sbr.rel (%p885) target = $region56
    $region55: #{actor_critic_forward.1} parent=5 // pred_region
      %s888 = ssub.s32 %s13, 2
      // Predicated region
      $region57: #{actor_critic_forward.1} parent=55 // pred_check
        %p889 = pneg %p194
      $region58: #{actor_critic_forward.1} parent=55 // pred_check_branch
        %891 = sbr.rel (%p889) target = $region60
      $region59: #{actor_critic_forward.1} parent=55 // pred_region
        %s892 = smul.u32 16, %s19
        %p893 = scmp.lt.s32.totalorder %s892, 31
        %s894 = scalar_select %p893, %s892, 31
        %s895 = smul.addr %s894, 8
        %s896 = scalar_lea.vmem %s7, %s895
      $region60: #{actor_critic_forward.1} parent=55 // pred_fallthru
        _
    $region56: #{actor_critic_forward.1} parent=5 // pred_fallthru
      _
  $region6: #{actor_critic_forward.1} parent=0 // loop_footer
    %s17 = sadd.s32 1, %s13
  $region7: #{actor_critic_forward.1} parent=0 // loop_footer_branch
    %12 = sbr.rel target = $region3
  $region8: #{actor_critic_forward.1} parent=0 // loop_exit
    _

</llo_original>
